<compile_context>
chip_gen: v6e
topology: v6e:2x2x1
jax: 0.10.0
libtpu: 0.0.40
codegen_flags: <defaults>
</compile_context>

<pallas_src>
import jax
import jax.numpy as jnp
from jax.experimental import pallas as pl
from jax.experimental.pallas import tpu as pltpu


def wlp_kernel(w_ref, sumw_ref, x_ref, o_ref):
    """Grid = (token_tiles, num_layers); layer axis is the reduction axis.

    w_ref:    (NL,)    SMEM  -- per-layer weights
    sumw_ref: (1,)     SMEM  -- sum(layer_weights)
    x_ref:    (TM, H)  VMEM  -- token tile of layer `l` (leading layer dim squeezed)
    o_ref:    (TM, H)  VMEM  -- f32 output tile, doubles as the accumulator
    """
    l = pl.program_id(1)

    @pl.when(l == 0)
    def _():
        o_ref[...] = jnp.zeros_like(o_ref)

    o_ref[...] += w_ref[l] * x_ref[...].astype(jnp.float32)

    @pl.when(l == pl.num_programs(1) - 1)
    def _():
        o_ref[...] = o_ref[...] / sumw_ref[0]


def _pick_token_tile(T):
    # Largest tile <= 1024 rows that divides T (keeps the sublane dim a
    # multiple of 8 for realistic shapes); tiny inputs fall back to the full
    # token axis, which is always layout-legal (block == full dim).
    for cand in (1024, 512, 256, 128, 64, 32, 16, 8):
        if T >= cand and T % cand == 0:
            return cand
    return T


def weighted_layer_pooling(all_hidden_states, layer_weights, layer_start=4):
    """all_hidden_states: (num_hidden_layers + 1, B, S, H)
    layer_weights:        (num_hidden_layers + 1 - layer_start,)
    returns:              (B, S, H) float32
    """
    L1, B, S, H = all_hidden_states.shape
    NL = L1 - layer_start
    assert layer_weights.shape == (NL,)

    T = B * S
    x = all_hidden_states[layer_start:].reshape(NL, T, H)

    w = layer_weights.astype(jnp.float32)
    sumw = jnp.sum(w).reshape(1)

    tm = _pick_token_tile(T)
    grid = (T // tm, NL)

    out = pl.pallas_call(
        wlp_kernel,
        out_shape=jax.ShapeDtypeStruct((T, H), jnp.float32),
        grid=grid,
        in_specs=[
            # Tiny scalar tables: resident in SMEM, constant index maps.
            pl.BlockSpec((NL,), lambda i, l: (0,),
                         memory_space=pltpu.MemorySpace.SMEM),
            pl.BlockSpec((1,), lambda i, l: (0,),
                         memory_space=pltpu.MemorySpace.SMEM),
            # One (TM, H) token tile of layer l; leading layer dim squeezed.
            pl.BlockSpec((pl.Squeezed(), tm, H), lambda i, l: (l, i, 0)),
        ],
        # Same output block across the layer axis -> stays VMEM-resident and
        # acts as the accumulator; written back to HBM once per token tile.
        out_specs=pl.BlockSpec((tm, H), lambda i, l: (i, 0)),
        compiler_params=pltpu.CompilerParams(
            dimension_semantics=("parallel", "arbitrary")),
    )(w, sumw, x)

    return out.reshape(B, S, H)


def reference_wlp(all_hidden_states, layer_weights, layer_start=4):
    x = all_hidden_states[layer_start:].astype(jnp.float32)
    w = layer_weights.astype(jnp.float32)[:, None, None, None]
    return (w * x).sum(axis=0) / layer_weights.sum()


if __name__ == "__main__":
    # Small shapes consistent with the module:
    # num_hidden_layers=6 (=> 7 stacked hidden states), layer_start=4,
    # batch=2, seq=8, hidden=32.
    num_hidden_layers = 6
    layer_start = 4
    B, S, H = 2, 8, 32
    NL = num_hidden_layers + 1 - layer_start

    key = jax.random.PRNGKey(0)
    k_x, k_w = jax.random.split(key, 2)

    all_hidden_states = jax.random.normal(
        k_x, (num_hidden_layers + 1, B, S, H), dtype=jnp.float32)
    # Non-uniform weights to exercise the weighting (module default is ones).
    layer_weights = 1.0 + jax.random.uniform(k_w, (NL,), dtype=jnp.float32)

    out = weighted_layer_pooling(all_hidden_states, layer_weights, layer_start)
    out = jax.block_until_ready(out)

    ref = reference_wlp(all_hidden_states, layer_weights, layer_start)
    assert out.shape == (B, S, H), out.shape
    assert jnp.allclose(out, ref, atol=1e-5, rtol=1e-5), (
        float(jnp.max(jnp.abs(out - ref))))

    print("KERNEL_OK")
</pallas_src>

<mosaic_0001>
module attributes {stable_mosaic.version = 11 : i64} {
  func.func @wlp_kernel(%arg0: i32, %arg1: i32, %arg2: memref<3xf32, #tpu.memory_space<smem>>, %arg3: memref<1xf32, #tpu.memory_space<smem>>, %arg4: memref<1x16x32xf32, #tpu.memory_space<vmem>>, %arg5: memref<16x32xf32, #tpu.memory_space<vmem>>) attributes {dimension_semantics = [#tpu.dimension_semantics<parallel>, #tpu.dimension_semantics<arbitrary>], iteration_bounds = array<i64: 1, 3>, scalar_prefetch = 0 : i64, scratch_operands = 0 : i64, tpu.core_type = #tpu.core_type<tc>, window_params = [{transform_indices = @transform_0, window_bounds = array<i64: 3>}, {transform_indices = @transform_1, window_bounds = array<i64: 1>}, {transform_indices = @transform_2, window_bounds = array<i64: 1, 16, 32>}, {transform_indices = @transform_3, window_bounds = array<i64: 16, 32>}]} {
    %c0_i32 = arith.constant 0 : i32
    %0 = arith.cmpi eq, %arg1, %c0_i32 : i32
    %1 = arith.extui %0 : i1 to i32
    %c0_i32_0 = arith.constant 0 : i32
    %2 = arith.cmpi ne, %1, %c0_i32_0 : i32
    scf.if %2 {
      %cst = arith.constant 0.000000e+00 : f32
      %15 = vector.broadcast %cst : f32 to vector<16x32xf32>
      %c0_8 = arith.constant 0 : index
      %c0_9 = arith.constant 0 : index
      %16 = vector.load %arg5[%c0_8, %c0_9] : memref<16x32xf32, #tpu.memory_space<vmem>>, vector<16x32xf32>
      tpu.vector_store %arg5[%c0_8, %c0_9], %15 {strides = array<i32>} : memref<16x32xf32, #tpu.memory_space<vmem>>, vector<16x32xf32>,
    } else {
    }
    %c0 = arith.constant 0 : index
    %c0_1 = arith.constant 0 : index
    %3 = vector.load %arg5[%c0, %c0_1] : memref<16x32xf32, #tpu.memory_space<vmem>>, vector<16x32xf32>
    %4 = arith.index_cast %arg1 : i32 to index
    %5 = memref.load %arg2[%4] : memref<3xf32, #tpu.memory_space<smem>>
    %c0_2 = arith.constant 0 : index
    %c0_3 = arith.constant 0 : index
    %c0_4 = arith.constant 0 : index
    %6 = vector.load %arg4[%c0_2, %c0_3, %c0_4] : memref<1x16x32xf32, #tpu.memory_space<vmem>>, vector<1x16x32xf32>
    %7 = vector.shape_cast %6 : vector<1x16x32xf32> to vector<16x32xf32>
    %8 = vector.broadcast %5 : f32 to vector<16x32xf32>
    %9 = arith.mulf %8, %7 : vector<16x32xf32>
    %10 = arith.addf %3, %9 : vector<16x32xf32>
    %c0_5 = arith.constant 0 : index
    %c0_6 = arith.constant 0 : index
    %11 = vector.load %arg5[%c0_5, %c0_6] : memref<16x32xf32, #tpu.memory_space<vmem>>, vector<16x32xf32>
    tpu.vector_store %arg5[%c0_5, %c0_6], %10 {strides = array<i32>} : memref<16x32xf32, #tpu.memory_space<vmem>>, vector<16x32xf32>,
    %c2_i32 = arith.constant 2 : i32
    %12 = arith.cmpi eq, %arg1, %c2_i32 : i32
    %13 = arith.extui %12 : i1 to i32
    %c0_i32_7 = arith.constant 0 : i32
    %14 = arith.cmpi ne, %13, %c0_i32_7 : i32
    scf.if %14 {
      %c0_8 = arith.constant 0 : index
      %c0_9 = arith.constant 0 : index
      %15 = vector.load %arg5[%c0_8, %c0_9] : memref<16x32xf32, #tpu.memory_space<vmem>>, vector<16x32xf32>
      %c0_10 = arith.constant 0 : index
      %16 = memref.load %arg3[%c0_10] : memref<1xf32, #tpu.memory_space<smem>>
      %17 = vector.broadcast %16 : f32 to vector<16x32xf32>
      %18 = arith.divf %15, %17 : vector<16x32xf32>
      %c0_11 = arith.constant 0 : index
      %c0_12 = arith.constant 0 : index
      %19 = vector.load %arg5[%c0_11, %c0_12] : memref<16x32xf32, #tpu.memory_space<vmem>>, vector<16x32xf32>
      tpu.vector_store %arg5[%c0_11, %c0_12], %18 {strides = array<i32>} : memref<16x32xf32, #tpu.memory_space<vmem>>, vector<16x32xf32>,
    } else {
    }
    return
  }
  func.func @transform_0(%arg0: i32, %arg1: i32) -> i32 {
    %c0_i32 = arith.constant 0 : i32
    %c0_i32_0 = arith.constant 0 : i32
    return %c0_i32 : i32
  }
  func.func @transform_1(%arg0: i32, %arg1: i32) -> i32 {
    %c0_i32 = arith.constant 0 : i32
    %c0_i32_0 = arith.constant 0 : i32
    return %c0_i32 : i32
  }
  func.func @transform_2(%arg0: i32, %arg1: i32) -> (i32, i32, i32) {
    %c0_i32 = arith.constant 0 : i32
    %c0_i32_0 = arith.constant 0 : i32
    return %arg1, %arg0, %c0_i32 : i32, i32, i32
  }
  func.func @transform_3(%arg0: i32, %arg1: i32) -> (i32, i32) {
    %c0_i32 = arith.constant 0 : i32
    %c0_i32_0 = arith.constant 0 : i32
    return %arg0, %c0_i32 : i32, i32
  }
}

</mosaic_0001>

<llo_original>
// kernel: tpu_custom_call.1
$region0: #{tpu_custom_call.1}
  #allocation0 [shape = 'u32[]', space=smem, size = 0x4, offset = 0x4, fixed_abs, tag = 'smem constant byte address 0x4 - core index']
  #allocation1 [shape = 'u32[144,128]{1,0:T(1,128)}', space=vmem, size = 0x12000, scoped, tag = 'internal scratch']
  #allocation2 [shape = 'f32[1]{0:T(128)S(6)}', space=smem, size = 0x200, scoped, tag = 'scoped memory for tpu_custom_call.1']
  %s0 = inlined_call_operand.vmem [shape: f32[3], index: 0, kind: input, shape index: {}]
  %s1 = inlined_call_operand.<no memory space> [shape: f32[1], index: 1, kind: input, shape index: {}]
  %s2 = inlined_call_operand.hbm [shape: f32[3,16,32], index: 2, kind: input, shape index: {}]
  %s3 = inlined_call_operand.hbm [shape: f32[16,32], index: 3, kind: output, shape index: {}]
  %s4 = sld [smem:[#allocation0]]
  $region61: #{tpu_custom_call.1} parent=0
    _
  %s6 = ssub.s32 1, %s4
  %s7 = scalar_select 0, %s6, %s4
  %8 = sst [smem:[#allocation2]] %s1
  $region1: #{tpu_custom_call.1} parent=0
    #allocation3 [shape = 'u8[512]{0}', space=smem, size = 0x200, scoped, tag = 'input window, operand 0, single buffered']
    #allocation4 [shape = 's32[2]{0}', space=sflag, size = 0x8, scoped, tag = 'scoped memory for tpu_custom_call.1']
    #allocation5 [shape = 's32[2]{0}', space=sflag, size = 0x8, scoped, tag = 'scoped memory for tpu_custom_call.1']
    #allocation6 [shape = 's32[2]{0}', space=sflag, size = 0x8, scoped, tag = 'scoped memory for tpu_custom_call.1']
    #allocation7 [shape = 'u8[16384]{0}', space=vmem, size = 0x4000, scoped, tag = 'input window, operand 2']
    #allocation8 [shape = 'u8[8192]{0}', space=vmem, size = 0x2000, scoped, tag = 'output window, operand 0, single buffered']
    %9 = vsyncpa [#allocation6], 0
    %10 = vsyncpa [#allocation4], 0
    %s11 = scalar_lea.sflag [#allocation4], 1
    %12 = vsyncpa %s11, 0
    %13 = vsyncpa [#allocation5], 0
    loop: start=0, step=1, limit=5
    $region2: #{tpu_custom_call.1} parent=1 // loop_pre_header
      _
    $region3: #{tpu_custom_call.1} parent=1 // loop_header
      %s15 = sphi 0, %s19
      %p16 = scmp.ge.s32.totalorder %s15, 5
      %s22 = sphi 0, %s34
      %s23 = sphi 0, %s30
      %s24 = sphi 0, %s22
      %s25 = sphi 0, %s23
      %s26 = sphi 0, %s24
      %s27 = sphi 0, %s25
      %s35 = sphi 0, %s35
      %s37 = sphi 0, %s35
      %s38 = sphi 0, %s37
      %s52 = sphi 0, %s38
      %s56 = sphi 0, %s56
      %s58 = sphi 0, %s56
      %s59 = sphi 0, %s58
      %s73 = sphi 0, %s59
      %s81 = sphi 0, %s83
      %s84 = sphi 0, %s81
      %s85 = sphi 0, %s84
      %s101 = sphi 0, %s85
      %s107 = sphi 0, %s109
      %s110 = sphi 0, %s107
      %s111 = sphi 0, %s110
      %s127 = sphi 0, %s111
    $region4: #{tpu_custom_call.1} parent=1 // loop_header_branch
      %18 = sbr.rel (%p16) target = $region8
    $region5: #{tpu_custom_call.1} parent=1 // loop_body
      %s20 = ssub.s32 %s15, 1
      %s21 = ssub.s32 %s15, 2
      %s28 = sadd.s32 1, %s23
      %p29 = scmp.ge.s32.totalorder %s28, 3
      %s30 = scalar_select %p29, 0, %s28
      %s31 = sadd.s32 1, %s22
      %s32 = scalar_select %p29, %s31, %s22
      %p33 = scmp.ge.s32.totalorder %s32, 1
      %s34 = scalar_select %p33, 0, %s32
      %s36 = sadd.s32 %s35, 1
      %p39 = scmp.eq.s32.totalorder %s15, 2
      %p40 = scmp.ne.s32.totalorder %s35, %s37
      %p41 = scmp.eq.s32.totalorder %s15, 0
      %p42 = por %p40, %p41
      %p43 = scmp.ne.s32.totalorder %s35, %s37
      %p44 = scmp.eq.s32.totalorder %s20, 2
      %p45 = por %p43, %p44
      %p46 = scmp.ne.s32.totalorder %s37, %s38
      %p47 = scmp.eq.s32.totalorder %s20, 0
      %p48 = por %p46, %p47
      %p49 = scmp.ne.s32.totalorder %s37, %s38
      %p50 = scmp.eq.s32.totalorder %s21, 2
      %p51 = por %p49, %p50
      %p53 = scmp.ne.s32.totalorder %s38, %s52
      %p54 = scmp.eq.s32.totalorder %s21, 0
      %p55 = por %p53, %p54
      %s57 = sadd.s32 %s56, 1
      %p60 = scmp.eq.s32.totalorder %s15, 2
      %p61 = scmp.ne.s32.totalorder %s56, %s58
      %p62 = scmp.eq.s32.totalorder %s15, 0
      %p63 = por %p61, %p62
      %p64 = scmp.ne.s32.totalorder %s56, %s58
      %p65 = scmp.eq.s32.totalorder %s20, 2
      %p66 = por %p64, %p65
      %p67 = scmp.ne.s32.totalorder %s58, %s59
      %p68 = scmp.eq.s32.totalorder %s20, 0
      %p69 = por %p67, %p68
      %p70 = scmp.ne.s32.totalorder %s58, %s59
      %p71 = scmp.eq.s32.totalorder %s21, 2
      %p72 = por %p70, %p71
      %p74 = scmp.ne.s32.totalorder %s59, %s73
      %p75 = scmp.eq.s32.totalorder %s21, 0
      %p76 = por %p74, %p75
      %s77 = ssub.s32 %s23, %s30
      %s78 = ssub.s32 %s22, %s34
      %s79 = sor.u32 %s77, %s78
      %p80 = scmp.eq.s32.totalorder %s79, 0
      %s82 = sadd.s32 %s81, 1
      %s83 = scalar_select %p80, %s81, %s82
      %p86 = pneg %p80
      %p87 = scmp.eq.s32.totalorder %s15, 2
      %p88 = por %p86, %p87
      %p89 = scmp.ne.s32.totalorder %s81, %s84
      %p90 = scmp.eq.s32.totalorder %s15, 0
      %p91 = por %p89, %p90
      %p92 = scmp.ne.s32.totalorder %s81, %s84
      %p93 = scmp.eq.s32.totalorder %s20, 2
      %p94 = por %p92, %p93
      %p95 = scmp.ne.s32.totalorder %s84, %s85
      %p96 = scmp.eq.s32.totalorder %s20, 0
      %p97 = por %p95, %p96
      %p98 = scmp.ne.s32.totalorder %s84, %s85
      %p99 = scmp.eq.s32.totalorder %s21, 2
      %p100 = por %p98, %p99
      %p102 = scmp.ne.s32.totalorder %s85, %s101
      %p103 = scmp.eq.s32.totalorder %s21, 0
      %p104 = por %p102, %p103
      %s105 = ssub.s32 %s22, %s34
      %p106 = scmp.eq.s32.totalorder %s105, 0
      %s108 = sadd.s32 %s107, 1
      %s109 = scalar_select %p106, %s107, %s108
      %p112 = pneg %p106
      %p113 = scmp.eq.s32.totalorder %s15, 2
      %p114 = por %p112, %p113
      %p115 = scmp.ne.s32.totalorder %s107, %s110
      %p116 = scmp.eq.s32.totalorder %s15, 0
      %p117 = por %p115, %p116
      %p118 = scmp.ne.s32.totalorder %s107, %s110
      %p119 = scmp.eq.s32.totalorder %s20, 2
      %p120 = por %p118, %p119
      %p121 = scmp.ne.s32.totalorder %s110, %s111
      %p122 = scmp.eq.s32.totalorder %s20, 0
      %p123 = por %p121, %p122
      %p124 = scmp.ne.s32.totalorder %s110, %s111
      %p125 = scmp.eq.s32.totalorder %s21, 2
      %p126 = por %p124, %p125
      %p128 = scmp.ne.s32.totalorder %s111, %s127
      %p129 = scmp.eq.s32.totalorder %s21, 0
      %p130 = por %p128, %p129
      %p131 = scmp.le.s32.totalorder 1, %s15
      %p132 = scmp.lt.s32.totalorder %s15, 4
      %p133 = pnand %p131, %p132
      %p134 = pneg %p133
      // Predicated region
      $region9: #{tpu_custom_call.1} parent=5 // pred_check
        _
      $region10: #{tpu_custom_call.1} parent=5 // pred_check_branch
        %136 = sbr.rel (%p133) target = $region12
      $region11: #{tpu_custom_call.1} parent=5 // pred_region
        %s137 = ssub.s32 %s15, 1
        // Predicated region
        $region13: #{tpu_custom_call.1} parent=11 // pred_check
          %p138 = pneg %p48
        $region14: #{tpu_custom_call.1} parent=11 // pred_check_branch
          %140 = sbr.rel (%p138) target = $region16
        $region15: #{tpu_custom_call.1} parent=11 // pred_region
          %s142 = ssub.s32 16, 16
          %143 = vsyncadd [#allocation6], %s142
          %s145 = sshll.u32 %s0, 4
          %s146 = int_to_ptr.vmem [resolvable:$true] %s145
          %148 = dma.vmem_to_smem %s146, 16, [#allocation3], [#allocation6]
        $region16: #{tpu_custom_call.1} parent=11 // pred_fallthru
          _
        // Predicated region
        $region17: #{tpu_custom_call.1} parent=11 // pred_check
          %p149 = pneg %p69
        $region18: #{tpu_custom_call.1} parent=11 // pred_check_branch
          %151 = sbr.rel (%p149) target = $region20
        $region19: #{tpu_custom_call.1} parent=11 // pred_region
          _
        $region20: #{tpu_custom_call.1} parent=11 // pred_fallthru
          _
      $region12: #{tpu_custom_call.1} parent=5 // pred_fallthru
        _
      %p152 = scmp.lt.s32.totalorder %s15, 3
      // Predicated region
      $region21: #{tpu_custom_call.1} parent=5 // pred_check
        %p153 = pneg %p152
      $region22: #{tpu_custom_call.1} parent=5 // pred_check_branch
        %155 = sbr.rel (%p153) target = $region24
      $region23: #{tpu_custom_call.1} parent=5 // pred_region
        // Predicated region
        $region25: #{tpu_custom_call.1} parent=23 // pred_check
          %p156 = pneg %p91
        $region26: #{tpu_custom_call.1} parent=23 // pred_check_branch
          %158 = sbr.rel (%p156) target = $region28
        $region27: #{tpu_custom_call.1} parent=23 // pred_region
          %s159 = sand.u32 %s81, 1
          %s160 = scalar_lea.sflag [#allocation4], %s159
          %s161 = sand.u32 %s81, 1
          %s162 = smul.addr %s161, 16
          %s163 = scalar_lea.vmem [#allocation7], %s162
          %s164 = smul.u32 2, %s22
          %s166 = ssub.s32 256, 256
          %167 = vsyncadd %s160, %s166
          %s168 = smul.addr %s23, 2
          %s169 = sadd.s32 %s164, %s168
          %s170 = smul.addr %s169, 128
          %s171 = scalar_lea.hbm %s2, %s170
          %s172 = sshll.u32 %s163, 4
          %s173 = int_to_ptr.vmem [resolvable:$true] %s172
          %178 = dma.hbm_to_vmem [thread:$0]  %s171, 256, %s173, %s160, 128, 128, 8
        $region28: #{tpu_custom_call.1} parent=23 // pred_fallthru
          _
      $region24: #{tpu_custom_call.1} parent=5 // pred_fallthru
        _
      %p179 = scmp.le.s32.totalorder 1, %s15
      %p180 = scmp.lt.s32.totalorder %s15, 4
      %p181 = pnand %p179, %p180
      %p182 = pneg %p181
      // Predicated region
      $region29: #{tpu_custom_call.1} parent=5 // pred_check
        _
      $region30: #{tpu_custom_call.1} parent=5 // pred_check_branch
        %184 = sbr.rel (%p181) target = $region32
      $region31: #{tpu_custom_call.1} parent=5 // pred_region
        %s185 = ssub.s32 %s15, 1
        // Predicated region
        $region33: #{tpu_custom_call.1} parent=31 // pred_check
          %p186 = pneg %p48
        $region34: #{tpu_custom_call.1} parent=31 // pred_check_branch
          %188 = sbr.rel (%p186) target = $region36
        $region35: #{tpu_custom_call.1} parent=31 // pred_region
          %189 = dma.done [#allocation6], 16
        $region36: #{tpu_custom_call.1} parent=31 // pred_fallthru
          _
        %s190 = sand.u32 %s84, 1
        %s191 = scalar_lea.sflag [#allocation4], %s190
        %s192 = sand.u32 %s84, 1
        %s193 = smul.addr %s192, 16
        %s194 = scalar_lea.vmem [#allocation7], %s193
        // Predicated region
        $region37: #{tpu_custom_call.1} parent=31 // pred_check
          %p195 = pneg %p97
        $region38: #{tpu_custom_call.1} parent=31 // pred_check_branch
          %197 = sbr.rel (%p195) target = $region40
        $region39: #{tpu_custom_call.1} parent=31 // pred_region
          %198 = dma.done %s191, 256
        $region40: #{tpu_custom_call.1} parent=31 // pred_fallthru
          _
        %199 = sfence
        %p200 = pneg %p48
        %p201 = pneg %p45
        %p202 = pneg %p69
        %p203 = pneg %p66
        %s204 = sand.u32 %s84, 1
        %s205 = scalar_lea.sflag [#allocation4], %s204
        %s206 = sand.u32 %s84, 1
        %s207 = smul.addr %s206, 16
        %s208 = scalar_lea.vmem [#allocation7], %s207
        %p209 = pneg %p97
        %p210 = pneg %p94
        %p211 = pneg %p123
        %p212 = pneg %p120
        %s213 = smul.u32 2, %s24
        %s214 = smul.u32 2, %s24
        %p215 = scmp.eq.s32.totalorder %s25, 0
        // Predicated region
        $region41: #{tpu_custom_call.1} parent=31 // pred_check
          %p216 = pneg %p215
        $region42: #{tpu_custom_call.1} parent=31 // pred_check_branch
          %218 = sbr.rel (%p216) target = $region44
        $region43: #{tpu_custom_call.1} parent=31 // pred_region
          %vm219 = vcmask 261120
          %220 = vst.msk [vmem:[#allocation8] sm:$0xff] %vm219, 0.0
          %221 = vst.msk [vmem:[#allocation8 + $0x8] sm:$0xff] %vm219, 0.0
        $region44: #{tpu_custom_call.1} parent=31 // pred_fallthru
          _
        %v222 = vld [vmem:[#allocation8] sm:$0xff]
        %v223 = vld [vmem:[#allocation8 + $0x8] sm:$0xff]
        %s224 = sld [smem:[#allocation3 + %s25]]
        %v225 = vld [vmem:[%s194] sm:$0xff]
        %v226 = vld [vmem:[%s194 + $0x8] sm:$0xff]
        %v227 = vstv %s224
        %v228 = vmul.f32 %v227, %v225
        %v229 = vmul.f32 %v227, %v226
        %v230 = vadd.f32 %v222, %v228
        %v231 = vadd.f32 %v223, %v229
        %vm232 = vcmask 261120
        %233 = vst.msk [vmem:[#allocation8] sm:$0xff] %vm232, %v230
        %234 = vst.msk [vmem:[#allocation8 + $0x8] sm:$0xff] %vm232, %v231
        %p235 = scmp.eq.s32.totalorder %s25, 2
        // Predicated region
        $region45: #{tpu_custom_call.1} parent=31 // pred_check
          %p236 = pneg %p235
        $region46: #{tpu_custom_call.1} parent=31 // pred_check_branch
          %238 = sbr.rel (%p236) target = $region48
        $region47: #{tpu_custom_call.1} parent=31 // pred_region
          %v239 = vld [vmem:[#allocation8] sm:$0xff]
          %v240 = vld [vmem:[#allocation8 + $0x8] sm:$0xff]
          %s241 = sld [smem:[#allocation2]]
          %v242 = vstv %s241
          %v243 = vrcp.pop %v242
          %v244 = vmul.f32 %v239, %v243
          %v245 = vmul.f32 %v240, %v243
          %246 = vst.msk [vmem:[#allocation8] sm:$0xff] %vm232, %v244
          %247 = vst.msk [vmem:[#allocation8 + $0x8] sm:$0xff] %vm232, %v245
        $region48: #{tpu_custom_call.1} parent=31 // pred_fallthru
          _
        // Predicated region
        $region49: #{tpu_custom_call.1} parent=31 // pred_check
          %p248 = pneg %p120
        $region50: #{tpu_custom_call.1} parent=31 // pred_check_branch
          %250 = sbr.rel (%p248) target = $region52
        $region51: #{tpu_custom_call.1} parent=31 // pred_region
          %s251 = smul.u32 2, %s24
          %s253 = ssub.s32 256, 256
          %254 = vsyncadd [#allocation5], %s253
          %s255 = smul.addr %s251, 128
          %s256 = scalar_lea.hbm %s3, %s255
          %s257 = sshll.u32 [#allocation8], 4
          %s258 = int_to_ptr.vmem [resolvable:$true] %s257
          %263 = dma.vmem_to_hbm [thread:$0]  %s258, 256, %s256, [#allocation5], 128, 128, 8
        $region52: #{tpu_custom_call.1} parent=31 // pred_fallthru
          _
        // Predicated region
        $region53: #{tpu_custom_call.1} parent=31 // pred_check
          %p264 = pneg %p120
        $region54: #{tpu_custom_call.1} parent=31 // pred_check_branch
          %266 = sbr.rel (%p264) target = $region56
        $region55: #{tpu_custom_call.1} parent=31 // pred_region
          %267 = dma.done [#allocation5], 256
        $region56: #{tpu_custom_call.1} parent=31 // pred_fallthru
          _
      $region32: #{tpu_custom_call.1} parent=5 // pred_fallthru
        _
      %p268 = scmp.le.s32.totalorder 2, %s15
      // Predicated region
      $region57: #{tpu_custom_call.1} parent=5 // pred_check
        %p269 = pneg %p268
      $region58: #{tpu_custom_call.1} parent=5 // pred_check_branch
        %271 = sbr.rel (%p269) target = $region60
      $region59: #{tpu_custom_call.1} parent=5 // pred_region
        %s272 = ssub.s32 %s15, 2
      $region60: #{tpu_custom_call.1} parent=5 // pred_fallthru
        _
    $region6: #{tpu_custom_call.1} parent=1 // loop_footer
      %s19 = sadd.s32 1, %s15
    $region7: #{tpu_custom_call.1} parent=1 // loop_footer_branch
      %14 = sbr.rel target = $region3
    $region8: #{tpu_custom_call.1} parent=1 // loop_exit
      _
    %273 = vsyncpa [#allocation4], 1
    %s274 = scalar_lea.sflag [#allocation4], 1
    %275 = vsyncpa %s274, 1
    %276 = vsyncpa [#allocation5], 1
    %s277 = scalar_lea.sflag [#allocation5], 1
    %278 = vsyncpa %s277, 1
    %279 = vsyncpa [#allocation6], 1
    %s280 = scalar_lea.sflag [#allocation6], 1
    %281 = vsyncpa %s280, 1

</llo_original>
